<compile_context>
chip_gen: v7x
topology: tpu7x:2x2x1
jax: 0.10.0
libtpu: 0.0.40
codegen_flags: <defaults>
</compile_context>

<pallas_src>
import jax
import jax.numpy as jnp
from jax.experimental import pallas as pl
from jax.experimental.pallas import tpu as pltpu


def _feature_weight_loss_kernel(vec3_ref, vec30_ref, scale_ref, out_ref):
    # One (B, D, T_tile) tile of each vector stream per grid step.
    diff = vec3_ref[...].astype(jnp.float32) - vec30_ref[...].astype(jnp.float32)
    dist = jnp.sqrt(jnp.sum(diff * diff, axis=1))       # (B, Tt) L2 over dim=-2
    out_ref[...] = dist * scale_ref[...]                # weights/sums pre-folded


def _pick_t_tile(B, D, T, itemsize, budget_bytes):
    """Pick the T tile: largest lane-dense tile whose double-buffered input
    footprint (2 streams x 2 buffers x B*D*tile*itemsize) fits the budget.
    Small T runs as a single full-extent block (no padding / masking needed)."""
    bytes_per_lane = 2 * 2 * B * D * itemsize
    max_lanes = max(128, budget_bytes // max(bytes_per_lane, 1))
    if T <= min(max_lanes, 1024):
        return T, 1                                     # one full-extent block
    t_tile = min(1024, max_lanes)
    t_tile = max(128, (t_tile // 128) * 128)            # lane-dense 128-multiple
    return t_tile, -(-T // t_tile)                      # cdiv; last tile partial


def feature_weight_loss(vec_3sec, vec_30sec, classify_result, label_3sec,
                        *, vmem_budget_bytes=8 * 1024 * 1024):
    """vec_*: (B, D, T) float; classify_result / label_3sec: (B, T) int."""
    B, D, T = vec_3sec.shape
    assert vec_30sec.shape == (B, D, T)
    assert classify_result.shape == (B, T) and label_3sec.shape == (B, T)

    # --- hoisted mask / normalisation math (tiny (B, T) arrays) -------------
    w_bool = classify_result == label_3sec
    sum_w = jnp.sum(w_bool.astype(jnp.int32))           # exact integer counts
    sum_nw = jnp.int32(w_bool.size) - sum_w
    w_f = w_bool.astype(jnp.float32)
    # Division by zero (all match / none match) yields inf/nan, same as torch.
    scale = (w_f / sum_w.astype(jnp.float32)
             - (1.0 - w_f) / sum_nw.astype(jnp.float32))  # (B, T) f32

    t_tile, num_t = _pick_t_tile(B, D, T, jnp.dtype(vec_3sec.dtype).itemsize,
                                 vmem_budget_bytes)

    return pl.pallas_call(
        _feature_weight_loss_kernel,
        out_shape=jax.ShapeDtypeStruct((B, T), jnp.float32),
        grid=(num_t,),
        in_specs=[
            pl.BlockSpec((B, D, t_tile), lambda t: (0, 0, t)),
            pl.BlockSpec((B, D, t_tile), lambda t: (0, 0, t)),
            pl.BlockSpec((B, t_tile), lambda t: (0, t)),
        ],
        out_specs=pl.BlockSpec((B, t_tile), lambda t: (0, t)),
        compiler_params=pltpu.CompilerParams(
            dimension_semantics=("parallel",)),
    )(vec_3sec, vec_30sec, scale)


def _reference(vec_3sec, vec_30sec, classify_result, label_3sec):
    w = jnp.where(classify_result == label_3sec, 1.0, 0.0)
    dist = jnp.sqrt(jnp.sum((vec_3sec - vec_30sec) ** 2, axis=-2))
    return w * dist / jnp.sum(w) - (1.0 - w) * dist / jnp.sum(1.0 - w)


if __name__ == "__main__":
    # Case 1: small deterministic shapes (batch=2, feature dim=32, frames=16),
    # single full-extent block.
    B, D, T = 2, 32, 16
    k1, k2, k3 = jax.random.split(jax.random.PRNGKey(0), 3)
    vec_3sec = jax.random.normal(k1, (B, D, T), dtype=jnp.float32)
    vec_30sec = jax.random.normal(k2, (B, D, T), dtype=jnp.float32)
    classify_result = jax.random.randint(k3, (B, T), 0, 4, dtype=jnp.int32)
    # Build labels so that both matches and mismatches exist (avoids 0/0).
    label_3sec = classify_result.at[:, ::2].set(classify_result[:, ::2] + 1)

    out = jax.block_until_ready(
        feature_weight_loss(vec_3sec, vec_30sec, classify_result, label_3sec))
    ref = _reference(vec_3sec, vec_30sec, classify_result, label_3sec)
    assert out.shape == (B, T)
    assert jnp.allclose(out, ref, atol=1e-5, rtol=1e-5), "mismatch vs reference"

    # Case 2: T not a multiple of 128, still one full-extent block (no pad).
    B2, D2, T2 = 2, 16, 300
    ka, kb, kc = jax.random.split(jax.random.PRNGKey(1), 3)
    v3 = jax.random.normal(ka, (B2, D2, T2), dtype=jnp.float32)
    v30 = jax.random.normal(kb, (B2, D2, T2), dtype=jnp.float32)
    cls = jax.random.randint(kc, (B2, T2), 0, 3, dtype=jnp.int32)
    lbl = cls.at[:, ::3].set(cls[:, ::3] + 1)
    out2 = jax.block_until_ready(feature_weight_loss(v3, v30, cls, lbl))
    ref2 = _reference(v3, v30, cls, lbl)
    assert jnp.allclose(out2, ref2, atol=1e-5, rtol=1e-5), "mismatch (full-block)"

    # Case 3: force the tiled path (tiny VMEM budget -> t_tile=128, 3 grid
    # steps, partial last tile) to exercise masked edge handling, no padding.
    out3 = jax.block_until_ready(
        feature_weight_loss(v3, v30, cls, lbl, vmem_budget_bytes=1))
    assert jnp.allclose(out3, ref2, atol=1e-5, rtol=1e-5), "mismatch (tiled)"

    print("KERNEL_OK")
</pallas_src>

<mosaic_0001>
module attributes {stable_mosaic.version = 11 : i64} {
  func.func @_feature_weight_loss_kernel(%arg0: i32, %arg1: memref<2x32x16xf32, #tpu.memory_space<vmem>>, %arg2: memref<2x32x16xf32, #tpu.memory_space<vmem>>, %arg3: memref<2x16xf32, #tpu.memory_space<vmem>>, %arg4: memref<2x16xf32, #tpu.memory_space<vmem>>) attributes {dimension_semantics = [#tpu.dimension_semantics<parallel>], iteration_bounds = array<i64: 1>, scalar_prefetch = 0 : i64, scratch_operands = 0 : i64, tpu.core_type = #tpu.core_type<tc>, window_params = [{transform_indices = @transform_0, window_bounds = array<i64: 2, 32, 16>}, {transform_indices = @transform_1, window_bounds = array<i64: 2, 32, 16>}, {transform_indices = @transform_2, window_bounds = array<i64: 2, 16>}, {transform_indices = @transform_3, window_bounds = array<i64: 2, 16>}]} {
    %c0 = arith.constant 0 : index
    %c0_0 = arith.constant 0 : index
    %c0_1 = arith.constant 0 : index
    %0 = vector.load %arg1[%c0, %c0_0, %c0_1] : memref<2x32x16xf32, #tpu.memory_space<vmem>>, vector<2x32x16xf32>
    %c0_2 = arith.constant 0 : index
    %c0_3 = arith.constant 0 : index
    %c0_4 = arith.constant 0 : index
    %1 = vector.load %arg2[%c0_2, %c0_3, %c0_4] : memref<2x32x16xf32, #tpu.memory_space<vmem>>, vector<2x32x16xf32>
    %2 = arith.subf %0, %1 : vector<2x32x16xf32>
    %3 = arith.mulf %2, %2 : vector<2x32x16xf32>
    %cst = arith.constant dense<0.000000e+00> : vector<2x16xf32>
    %4 = vector.multi_reduction <add>, %3, %cst [1] : vector<2x32x16xf32> to vector<2x16xf32>
    %5 = math.sqrt %4 : vector<2x16xf32>
    %c0_5 = arith.constant 0 : index
    %c0_6 = arith.constant 0 : index
    %6 = vector.load %arg3[%c0_5, %c0_6] : memref<2x16xf32, #tpu.memory_space<vmem>>, vector<2x16xf32>
    %7 = arith.mulf %5, %6 : vector<2x16xf32>
    %c0_7 = arith.constant 0 : index
    %c0_8 = arith.constant 0 : index
    %8 = vector.load %arg4[%c0_7, %c0_8] : memref<2x16xf32, #tpu.memory_space<vmem>>, vector<2x16xf32>
    tpu.vector_store %arg4[%c0_7, %c0_8], %7 {strides = array<i32>} : memref<2x16xf32, #tpu.memory_space<vmem>>, vector<2x16xf32>,
    return
  }
  func.func @transform_0(%arg0: i32) -> (i32, i32, i32) {
    %c0_i32 = arith.constant 0 : i32
    %c0_i32_0 = arith.constant 0 : i32
    %c0_i32_1 = arith.constant 0 : i32
    return %c0_i32, %c0_i32_0, %arg0 : i32, i32, i32
  }
  func.func @transform_1(%arg0: i32) -> (i32, i32, i32) {
    %c0_i32 = arith.constant 0 : i32
    %c0_i32_0 = arith.constant 0 : i32
    %c0_i32_1 = arith.constant 0 : i32
    return %c0_i32, %c0_i32_0, %arg0 : i32, i32, i32
  }
  func.func @transform_2(%arg0: i32) -> (i32, i32) {
    %c0_i32 = arith.constant 0 : i32
    %c0_i32_0 = arith.constant 0 : i32
    return %c0_i32, %arg0 : i32, i32
  }
  func.func @transform_3(%arg0: i32) -> (i32, i32) {
    %c0_i32 = arith.constant 0 : i32
    %c0_i32_0 = arith.constant 0 : i32
    return %c0_i32, %arg0 : i32, i32
  }
}

</mosaic_0001>

<llo_original>
// kernel: tpu_custom_call.1
$region0: #{tpu_custom_call.1}
  #allocation0 [shape = 'u32[]', space=smem, size = 0x4, offset = 0x4, fixed_abs, tag = 'smem constant byte address 0x4 - core index']
  #allocation1 [shape = 'u32[144,128]{1,0:T(1,128)}', space=vmem, size = 0x12000, scoped, tag = 'internal scratch']
  %s0 = inlined_call_operand.vmem [shape: f32[2,32,16], index: 0, kind: input, shape index: {}]
  %s1 = inlined_call_operand.vmem [shape: f32[2,32,16], index: 1, kind: input, shape index: {}]
  %s2 = inlined_call_operand.vmem [shape: f32[2,16], index: 2, kind: input, shape index: {}]
  %s3 = inlined_call_operand.hbm [shape: f32[2,16], index: 3, kind: output, shape index: {}]
  %s4 = sld [smem:[#allocation0]]
  $region22: #{tpu_custom_call.1} parent=0
    _
  %s6 = ssub.s32 1, %s4
  %s7 = scalar_select 0, %s6, %s4
  $region1: #{tpu_custom_call.1} parent=0
    #allocation2 [shape = 'u8[1024]{0}', space=vmem, size = 0x400, scoped, tag = 'output window, operand 0, single buffered']
    #allocation3 [shape = 's32[1]{0}', space=sflag, size = 0x4, scoped, tag = 'scoped memory for tpu_custom_call.1']
    %8 = vsyncpa [#allocation3], 0
    // Predicated region
    $region2: #{tpu_custom_call.1} parent=1 // pred_check
      _
    $region3: #{tpu_custom_call.1} parent=1 // pred_check_branch
      %10 = sbr.rel (0) target = $region5
    $region4: #{tpu_custom_call.1} parent=1 // pred_region
      _
    $region5: #{tpu_custom_call.1} parent=1 // pred_fallthru
      _
    // Predicated region
    $region6: #{tpu_custom_call.1} parent=1 // pred_check
      _
    $region7: #{tpu_custom_call.1} parent=1 // pred_check_branch
      %12 = sbr.rel (0) target = $region9
    $region8: #{tpu_custom_call.1} parent=1 // pred_region
      _
    $region9: #{tpu_custom_call.1} parent=1 // pred_fallthru
      _
    // Predicated region
    $region10: #{tpu_custom_call.1} parent=1 // pred_check
      _
    $region11: #{tpu_custom_call.1} parent=1 // pred_check_branch
      %14 = sbr.rel (0) target = $region13
    $region12: #{tpu_custom_call.1} parent=1 // pred_region
      _
    $region13: #{tpu_custom_call.1} parent=1 // pred_fallthru
      _
    %v15 = vld [vmem:[%s0] sm:$0xff]
    %v16 = vld [vmem:[%s0 + $0x8] sm:$0xff]
    %v17 = vld [vmem:[%s0 + $0x10] sm:$0xff]
    %v18 = vld [vmem:[%s0 + $0x18] sm:$0xff]
    %v19 = vld [vmem:[%s0 + $0x20] sm:$0xff]
    %v20 = vld [vmem:[%s0 + $0x28] sm:$0xff]
    %v21 = vld [vmem:[%s0 + $0x30] sm:$0xff]
    %v22 = vld [vmem:[%s0 + $0x38] sm:$0xff]
    %v23 = vld [vmem:[%s1] sm:$0xff]
    %v24 = vld [vmem:[%s1 + $0x8] sm:$0xff]
    %v25 = vld [vmem:[%s1 + $0x10] sm:$0xff]
    %v26 = vld [vmem:[%s1 + $0x18] sm:$0xff]
    %v27 = vld [vmem:[%s1 + $0x20] sm:$0xff]
    %v28 = vld [vmem:[%s1 + $0x28] sm:$0xff]
    %v29 = vld [vmem:[%s1 + $0x30] sm:$0xff]
    %v30 = vld [vmem:[%s1 + $0x38] sm:$0xff]
    %v31 = vsub.f32 %v15, %v23
    %v32 = vsub.f32 %v16, %v24
    %v33 = vsub.f32 %v17, %v25
    %v34 = vsub.f32 %v18, %v26
    %v35 = vsub.f32 %v19, %v27
    %v36 = vsub.f32 %v20, %v28
    %v37 = vsub.f32 %v21, %v29
    %v38 = vsub.f32 %v22, %v30
    %v39 = vmul.f32 %v31, %v31
    %v40 = vmul.f32 %v32, %v32
    %v41 = vmul.f32 %v33, %v33
    %v42 = vmul.f32 %v34, %v34
    %v43 = vmul.f32 %v35, %v35
    %v44 = vmul.f32 %v36, %v36
    %v45 = vmul.f32 %v37, %v37
    %v46 = vmul.f32 %v38, %v38
    %vm47 = vcmask 130048
    %v48 = vsel %vm47, %v39, 0.0
    %v49 = vsel %vm47, %v40, 0.0
    %v50 = vadd.f32 %v48, %v49
    %v51 = vsel %vm47, %v41, 0.0
    %v52 = vadd.f32 %v50, %v51
    %v53 = vsel %vm47, %v42, 0.0
    %v54 = vadd.f32 %v52, %v53
    %v55 = vrot.slane %v54, 4
    %v56 = vadd.f32 %v54, %v55
    %v57 = vrot.slane %v56, 2
    %v58 = vadd.f32 %v56, %v57
    %v59 = vrot.slane %v58, 1
    %v60 = vadd.f32 %v58, %v59
    %v61 = vsel %vm47, %v43, 0.0
    %v62 = vsel %vm47, %v44, 0.0
    %v63 = vadd.f32 %v61, %v62
    %v64 = vsel %vm47, %v45, 0.0
    %v65 = vadd.f32 %v63, %v64
    %v66 = vsel %vm47, %v46, 0.0
    %v67 = vadd.f32 %v65, %v66
    %v68 = vrot.slane %v67, 4
    %v69 = vadd.f32 %v67, %v68
    %v70 = vrot.slane %v69, 2
    %v71 = vadd.f32 %v69, %v70
    %v72 = vrot.slane %v71, 1
    %v73 = vadd.f32 %v71, %v72
    %v74 = vrsqrt.pop %v60
    %v75 = vmul.f32 %v60, %v74
    %vm76 = vcmp.eq.f32.partialorder %v60, inf
    %v77 = vsel %vm76, %v60, %v75
    %vm78 = vcmp.eq.f32.partialorder %v60, 0.0
    %v79 = vand.u32 %v60, 2147483648
    %v80 = vsel %vm78, %v79, %v77
    %v81 = vrsqrt.pop %v73
    %v82 = vmul.f32 %v73, %v81
    %vm83 = vcmp.eq.f32.partialorder %v73, inf
    %v84 = vsel %vm83, %v73, %v82
    %vm85 = vcmp.eq.f32.partialorder %v73, 0.0
    %v86 = vand.u32 %v73, 2147483648
    %v87 = vsel %vm85, %v86, %v84
    %v88 = vld [vmem:[%s2] sm:$0x3]
    %v90 = vrot.slane %v88, 1
    %v93 = vmul.f32 %v80, %v88
    %v94 = vmul.f32 %v87, %v90
    %v97 = vrot.slane %v94, 7
    %vm98 = vcmask 1041409
    %v99 = vsel %vm98, %v97, %v93
    %vm101 = vcmask 123904
    %102 = vst.msk [vmem:[#allocation2] sm:$0x3] %vm101, %v99
    // Predicated region
    $region14: #{tpu_custom_call.1} parent=1 // pred_check
      _
    $region15: #{tpu_custom_call.1} parent=1 // pred_check_branch
      %104 = sbr.rel (0) target = $region17
    $region16: #{tpu_custom_call.1} parent=1 // pred_region
      %s106 = ssub.s32 32, 32
      %107 = vsyncadd [#allocation3], %s106
      %s109 = sshll.u32 [#allocation2], 4
      %s110 = int_to_ptr.vmem [resolvable:$true] %s109
      %112 = dma.vmem_to_hbm [thread:$0]  %s110, 32, %s3, [#allocation3]
    $region17: #{tpu_custom_call.1} parent=1 // pred_fallthru
      _
    // Predicated region
    $region18: #{tpu_custom_call.1} parent=1 // pred_check
      _
    $region19: #{tpu_custom_call.1} parent=1 // pred_check_branch
      %114 = sbr.rel (0) target = $region21
    $region20: #{tpu_custom_call.1} parent=1 // pred_region
      %115 = dma.done [#allocation3], 32
    $region21: #{tpu_custom_call.1} parent=1 // pred_fallthru
      _
    %116 = vsyncpa [#allocation3], 1

</llo_original>
